<compile_context>
chip_gen: v7x
topology: tpu7x:2x2x1
jax: 0.10.0
libtpu: 0.0.40
codegen_flags: <defaults>
</compile_context>

<pallas_src>
import functools

import jax
import jax.numpy as jnp
from jax.experimental import pallas as pl
from jax.experimental.pallas import tpu as pltpu

# ---- constants fixed by the PyTorch module ----------------------------------
C_HALF = 4                    # q / k channels
C_IN = 8                      # cat((q, k), dim=1)
C_OUT = 8                     # q_k_proj conv out channels
KH = KW = 3
SH = SW = 2
H, W = 11, 21
OH = (H - KH) // SH + 1       # 5
OW = (W - KW) // SW + 1       # 10
P = OH * OW                   # 50  (== d_k in the attention scaling)
P_PAD = 64                    # padded patch count: power of two, multiple of 8
K_IM2COL = C_IN * KH * KW     # 72 im2col rows
K_AUG = K_IM2COL + 1          # 73: + "ones" row that carries the conv bias
K_PAD = 80                    # contraction zero-padded (multiple of 16 for bf16 tiles)
PARAM_COLS = K_PAD + 2        # 82: [W | bias | zeros | gamma | beta]
BN_EPS = 1e-5

assert P_PAD >= P and (P_PAD & (P_PAD - 1)) == 0
assert K_PAD >= K_AUG and K_PAD % 16 == 0


# ---- kernel ------------------------------------------------------------------
def _mta_kernel(patches_ref, params_ref, out_ref, *, batch_size):
    """Fused conv(as matmul) + ReLU + BatchNorm2d + QK^T + softmax + query-mean.

    patches_ref : (B, K_PAD, P_PAD) bf16 transposed im2col patches per batch;
                  row 72 is 1.0 on valid patch columns / 0.0 on pad columns, rows
                  73..79 and columns 50..63 are all zero.
    params_ref  : (8, 82) f32 packed params:
                  cols 0:72 = conv W ((ci,ky,kx)-major flatten), col 72 = conv bias,
                  cols 73:80 = zeros, col 80 = BN gamma, col 81 = BN beta.
    out_ref     : (B, 4) f32
    """
    # Slice the packed parameter slab (1 DMA instead of 4).
    w_aug = params_ref[:, 0:K_PAD].astype(jnp.bfloat16)          # (8, 80): W | bias | 0
    gamma = params_ref[:, K_PAD:K_PAD + 1]                       # (8, 1) f32
    beta = params_ref[:, K_PAD + 1:K_PAD + 2]                    # (8, 1) f32

    # Conv2d(8->8, k=3, s=2, p=0) as one small bf16 MXU matmul per batch.  The bias is
    # folded in via the ones-row/bias-column, so pad columns come out exactly 0 and no
    # pre-BN mask is needed.  Batch selection is a major-dim index (no lane slices).
    xs = []
    s_acc = jnp.zeros((C_OUT, 1), jnp.float32)
    ss_acc = jnp.zeros((C_OUT, 1), jnp.float32)
    for b in range(batch_size):
        xb = jnp.dot(w_aug, patches_ref[b],
                     preferred_element_type=jnp.float32)         # (8, 64) f32
        xb = jnp.maximum(xb, 0.0)                                # ReLU; pad cols stay 0
        xs.append(xb)
        # One-pass BN stats: two independent lane reductions (overlap on the XLUs).
        s_acc = s_acc + jnp.sum(xb, axis=1, keepdims=True)
        ss_acc = ss_acc + jnp.sum(xb * xb, axis=1, keepdims=True)

    # BatchNorm2d, training-mode semantics: biased stats over the B*P valid positions
    # per channel (pad columns contribute exactly 0; divisor is the true count).
    inv_n = 1.0 / float(batch_size * P)
    mean = s_acc * inv_n                                         # (8, 1)
    var = jnp.maximum(ss_acc * inv_n - mean * mean, 0.0)         # (8, 1)
    rstd = jax.lax.rsqrt(var + BN_EPS)

    # Fold 1/sqrt(d_k) into the affine of the query channels (rows < 4): queries and keys
    # come from disjoint channels, so scaling the query half scales the scores exactly.
    row = jax.lax.broadcasted_iota(jnp.int32, (C_OUT, 1), 0)
    qscale = jnp.where(row < C_HALF, 1.0 / jnp.sqrt(jnp.float32(P)), 1.0)
    scale = gamma * rstd * qscale                                # (8, 1)
    shift = (beta - gamma * mean * rstd) * qscale                # (8, 1)

    # Post-BN validity mask over patch columns: required so `shift` does not leak into
    # pad columns and pollute the score contraction.
    col = jax.lax.broadcasted_iota(jnp.int32, (1, P_PAD), 1)
    mask = (col < P).astype(jnp.float32)                         # (1, 64)

    inv_q = 1.0 / float(C_HALF)
    rows = []
    for b in range(batch_size):
        yb = ((xs[b] * scale + shift) * mask).astype(jnp.bfloat16)   # (8, 64)
        qb = yb[:C_HALF, :]                                      # sublane slice (4, 64)
        kb = yb[C_HALF:, :]                                      # sublane slice (4, 64)
        # Only the needed (4,4) score block; contraction over the 64 patch lanes.
        s = jax.lax.dot_general(qb, kb, (((1,), (1,)), ((), ())),
                                preferred_element_type=jnp.float32)  # (4, 4)
        # softmax over the key index
        s = s - jnp.max(s, axis=-1, keepdims=True)
        e = jnp.exp(s)
        attn = e * pl.reciprocal(jnp.sum(e, axis=-1, keepdims=True), approx=True)
        # mean over the query index (torch dim=1)
        rows.append(jnp.sum(attn, axis=0, keepdims=True) * inv_q)    # (1, 4)

    # Single (B, 4) store.  (If this op were replicated in a hot loop, a lane-dense
    # (B, 128) slab sliced in the wrapper would avoid the masked partial store.)
    out_ref[...] = jnp.concatenate(rows, axis=0)


# ---- glue (layout plumbing only) ---------------------------------------------
def _build_patches(q_k, batch_size):
    """(B, 8, 11, 21) NCHW -> (B, K_PAD, P_PAD) bf16 transposed patches.

    Row index = ci*9 + ky*3 + kx (matches conv_w.reshape(8, 72)); row 72 is the
    ones/validity row; rows 73..79 and columns 50..63 are zero.  Built directly in
    this order (no physical transpose needed).
    """
    taps = []
    for ky in range(KH):
        for kx in range(KW):
            taps.append(q_k[:, :, ky: ky + SH * OH: SH, kx: kx + SW * OW: SW])  # (B,8,5,10)
    t = jnp.stack(taps, axis=2)                                  # (B, 8, 9, 5, 10)
    t = t.reshape(batch_size, K_IM2COL, P)                       # (B, 72, 50)
    ones = jnp.ones((batch_size, 1, P), jnp.float32)             # bias / validity row
    t = jnp.concatenate([t, ones], axis=1)                       # (B, 73, 50)
    t = jnp.pad(t, ((0, 0), (0, K_PAD - K_AUG), (0, P_PAD - P))) # (B, 80, 64)
    return t.astype(jnp.bfloat16)


def _pack_params(params):
    """-> (8, 82) f32: [W(72) | bias | zeros(7) | gamma | beta]."""
    w = params["conv_w"].reshape(C_OUT, K_IM2COL).astype(jnp.float32)
    b = params["conv_b"].reshape(C_OUT, 1).astype(jnp.float32)
    z = jnp.zeros((C_OUT, K_PAD - K_AUG), jnp.float32)
    g = params["bn_gamma"].reshape(C_OUT, 1).astype(jnp.float32)
    bt = params["bn_beta"].reshape(C_OUT, 1).astype(jnp.float32)
    return jnp.concatenate([w, b, z, g, bt], axis=1)             # (8, 82)


@functools.partial(jax.jit, static_argnames=("batch_size",))
def multi_tensor_attention(q, k, v, params, *, batch_size):
    del v  # unused by the reference forward
    q = q.reshape(batch_size, C_HALF, H, W)
    k = k.reshape(batch_size, C_HALF, H, W)
    q_k = jnp.concatenate([q, k], axis=1)                        # (B, 8, 11, 21) NCHW
    patches = _build_patches(q_k, batch_size)                    # (B, 80, 64) bf16
    packed = _pack_params(params)                                # (8, 82) f32

    kernel = functools.partial(_mta_kernel, batch_size=batch_size)
    return pl.pallas_call(
        kernel,
        out_shape=jax.ShapeDtypeStruct((batch_size, C_HALF), jnp.float32),
        in_specs=[pl.BlockSpec(memory_space=pltpu.MemorySpace.VMEM)] * 2,
        out_specs=pl.BlockSpec(memory_space=pltpu.MemorySpace.VMEM),
    )(patches, packed)


# ---- pure-JAX reference (for a correctness check) ----------------------------
def _reference(q, k, params, batch_size):
    q = q.reshape(batch_size, C_HALF, H, W)
    k = k.reshape(batch_size, C_HALF, H, W)
    x = jnp.concatenate([q, k], axis=1)
    y = jax.lax.conv_general_dilated(
        x, params["conv_w"], window_strides=(SH, SW), padding="VALID",
        dimension_numbers=("NCHW", "OIHW", "NCHW"))
    y = y + params["conv_b"].reshape(1, C_OUT, 1, 1)
    y = jnp.maximum(y, 0.0)
    mean = jnp.mean(y, axis=(0, 2, 3), keepdims=True)
    var = jnp.mean((y - mean) ** 2, axis=(0, 2, 3), keepdims=True)
    y = (y - mean) / jnp.sqrt(var + BN_EPS)
    y = y * params["bn_gamma"].reshape(1, C_OUT, 1, 1) + params["bn_beta"].reshape(1, C_OUT, 1, 1)
    queries = y[:, :C_HALF].reshape(batch_size, C_HALF, -1)
    keys = y[:, C_HALF:].reshape(batch_size, C_HALF, -1)
    scores = jnp.einsum("bid,bjd->bij", queries, keys) / jnp.sqrt(jnp.float32(P))
    attn = jax.nn.softmax(scores, axis=-1)
    return jnp.mean(attn, axis=1)


if __name__ == "__main__":
    key = jax.random.PRNGKey(0)
    kq, kk, kv, kw, kb, kg, kbt = jax.random.split(key, 7)
    B = 2
    q = jax.random.normal(kq, (B, C_HALF, H, W), jnp.float32)
    k = jax.random.normal(kk, (B, C_HALF, H, W), jnp.float32)
    v = jax.random.normal(kv, (B, C_HALF, H, W), jnp.float32)  # unused, as in torch
    params = {
        "conv_w": 0.1 * jax.random.normal(kw, (C_OUT, C_IN, KH, KW), jnp.float32),
        "conv_b": 0.1 * jax.random.normal(kb, (C_OUT,), jnp.float32),
        "bn_gamma": 1.0 + 0.1 * jax.random.normal(kg, (C_OUT,), jnp.float32),
        "bn_beta": 0.1 * jax.random.normal(kbt, (C_OUT,), jnp.float32),
    }

    out = multi_tensor_attention(q, k, v, params, batch_size=B)
    out = jax.block_until_ready(out)
    ref = _reference(q, k, params, B)
    assert out.shape == (B, C_HALF), out.shape
    # Tolerance accounts for the bf16 MXU inputs (patches / conv weights / normalized
    # features) and the approximate (EUP) reciprocal in the softmax denominator; the
    # f32 reference stays exact.  Observed error is well inside this bound.
    assert jnp.allclose(out, ref, atol=2e-2, rtol=2e-2), (out, ref)
    print("KERNEL_OK")
</pallas_src>

<mosaic_0001>
module attributes {stable_mosaic.version = 11 : i64} {
  func.func @_mta_kernel(%arg0: memref<2x80x64xbf16, #tpu.memory_space<vmem>>, %arg1: memref<8x82xf32, #tpu.memory_space<vmem>>, %arg2: memref<2x4xf32, #tpu.memory_space<vmem>>) attributes {dimension_semantics = [], scalar_prefetch = 0 : i64, scratch_operands = 0 : i64, tpu.core_type = #tpu.core_type<tc>} {
    %c0 = arith.constant 0 : index
    %c0_0 = arith.constant 0 : index
    %0 = vector.load %arg1[%c0, %c0_0] : memref<8x82xf32, #tpu.memory_space<vmem>>, vector<8x80xf32>
    %1 = arith.truncf %0 : vector<8x80xf32> to vector<8x80xbf16>
    %c0_1 = arith.constant 0 : index
    %c80 = arith.constant 80 : index
    %2 = vector.load %arg1[%c0_1, %c80] : memref<8x82xf32, #tpu.memory_space<vmem>>, vector<8x1xf32>
    %c0_2 = arith.constant 0 : index
    %c81 = arith.constant 81 : index
    %3 = vector.load %arg1[%c0_2, %c81] : memref<8x82xf32, #tpu.memory_space<vmem>>, vector<8x1xf32>
    %cst = arith.constant 0.000000e+00 : f32
    %4 = vector.broadcast %cst : f32 to vector<8x1xf32>
    %cst_3 = arith.constant 0.000000e+00 : f32
    %5 = vector.broadcast %cst_3 : f32 to vector<8x1xf32>
    %c0_4 = arith.constant 0 : index
    %c0_5 = arith.constant 0 : index
    %c0_6 = arith.constant 0 : index
    %6 = vector.load %arg0[%c0_4, %c0_5, %c0_6] : memref<2x80x64xbf16, #tpu.memory_space<vmem>>, vector<1x80x64xbf16>
    %7 = vector.shape_cast %6 : vector<1x80x64xbf16> to vector<80x64xbf16>
    %cst_7 = arith.constant dense<0.000000e+00> : vector<8x64xf32>
    %8 = tpu.matmul %1, %7, %cst_7 {dimension_numbers = #tpu.dot_dimension_numbers<[1], [0], [0], [1], [0, 0, 1, 1], [], []>} : vector<8x80xbf16>, vector<80x64xbf16>, vector<8x64xf32> -> vector<8x64xf32>
    %cst_8 = arith.constant 0.000000e+00 : f32
    %9 = vector.broadcast %cst_8 : f32 to vector<8x64xf32>
    %10 = arith.maximumf %8, %9 : vector<8x64xf32>
    %cst_9 = arith.constant dense<0.000000e+00> : vector<8xf32>
    %11 = vector.multi_reduction <add>, %10, %cst_9 [1] : vector<8x64xf32> to vector<8xf32>
    %12 = vector.shape_cast %11 : vector<8xf32> to vector<8x1xf32>
    %13 = arith.addf %4, %12 : vector<8x1xf32>
    %14 = arith.mulf %10, %10 : vector<8x64xf32>
    %cst_10 = arith.constant dense<0.000000e+00> : vector<8xf32>
    %15 = vector.multi_reduction <add>, %14, %cst_10 [1] : vector<8x64xf32> to vector<8xf32>
    %16 = vector.shape_cast %15 : vector<8xf32> to vector<8x1xf32>
    %17 = arith.addf %5, %16 : vector<8x1xf32>
    %c1 = arith.constant 1 : index
    %c0_11 = arith.constant 0 : index
    %c0_12 = arith.constant 0 : index
    %18 = vector.load %arg0[%c1, %c0_11, %c0_12] : memref<2x80x64xbf16, #tpu.memory_space<vmem>>, vector<1x80x64xbf16>
    %19 = vector.shape_cast %18 : vector<1x80x64xbf16> to vector<80x64xbf16>
    %cst_13 = arith.constant dense<0.000000e+00> : vector<8x64xf32>
    %20 = tpu.matmul %1, %19, %cst_13 {dimension_numbers = #tpu.dot_dimension_numbers<[1], [0], [0], [1], [0, 0, 1, 1], [], []>} : vector<8x80xbf16>, vector<80x64xbf16>, vector<8x64xf32> -> vector<8x64xf32>
    %cst_14 = arith.constant 0.000000e+00 : f32
    %21 = vector.broadcast %cst_14 : f32 to vector<8x64xf32>
    %22 = arith.maximumf %20, %21 : vector<8x64xf32>
    %cst_15 = arith.constant dense<0.000000e+00> : vector<8xf32>
    %23 = vector.multi_reduction <add>, %22, %cst_15 [1] : vector<8x64xf32> to vector<8xf32>
    %24 = vector.shape_cast %23 : vector<8xf32> to vector<8x1xf32>
    %25 = arith.addf %13, %24 : vector<8x1xf32>
    %26 = arith.mulf %22, %22 : vector<8x64xf32>
    %cst_16 = arith.constant dense<0.000000e+00> : vector<8xf32>
    %27 = vector.multi_reduction <add>, %26, %cst_16 [1] : vector<8x64xf32> to vector<8xf32>
    %28 = vector.shape_cast %27 : vector<8xf32> to vector<8x1xf32>
    %29 = arith.addf %17, %28 : vector<8x1xf32>
    %cst_17 = arith.constant 0.00999999977 : f32
    %30 = vector.broadcast %cst_17 : f32 to vector<8x1xf32>
    %31 = arith.mulf %25, %30 : vector<8x1xf32>
    %cst_18 = arith.constant 0.00999999977 : f32
    %32 = vector.broadcast %cst_18 : f32 to vector<8x1xf32>
    %33 = arith.mulf %29, %32 : vector<8x1xf32>
    %34 = arith.mulf %31, %31 : vector<8x1xf32>
    %35 = arith.subf %33, %34 : vector<8x1xf32>
    %cst_19 = arith.constant 0.000000e+00 : f32
    %36 = vector.broadcast %cst_19 : f32 to vector<8x1xf32>
    %37 = arith.maximumf %35, %36 : vector<8x1xf32>
    %cst_20 = arith.constant 9.99999974E-6 : f32
    %38 = vector.broadcast %cst_20 : f32 to vector<8x1xf32>
    %39 = arith.addf %37, %38 : vector<8x1xf32>
    %40 = math.rsqrt %39 : vector<8x1xf32>
    %41 = tpu.iota {dimensions = array<i32: 0>} : vector<8x1xi32>
    %c4_i32 = arith.constant 4 : i32
    %42 = vector.broadcast %c4_i32 : i32 to vector<8x1xi32>
    %43 = arith.cmpi slt, %41, %42 : vector<8x1xi32>
    %cst_21 = arith.constant 5.000000e+01 : f32
    %44 = math.sqrt %cst_21 : f32
    %cst_22 = arith.constant 1.000000e+00 : f32
    %45 = arith.divf %cst_22, %44 : f32
    %cst_23 = arith.constant 1.000000e+00 : f32
    %46 = vector.broadcast %45 : f32 to vector<8x1xf32>
    %47 = vector.broadcast %cst_23 : f32 to vector<8x1xf32>
    %48 = arith.select %43, %46, %47 : vector<8x1xi1>, vector<8x1xf32>
    %49 = arith.mulf %2, %40 : vector<8x1xf32>
    %50 = arith.mulf %49, %48 : vector<8x1xf32>
    %51 = arith.mulf %2, %31 : vector<8x1xf32>
    %52 = arith.mulf %51, %40 : vector<8x1xf32>
    %53 = arith.subf %3, %52 : vector<8x1xf32>
    %54 = arith.mulf %53, %48 : vector<8x1xf32>
    %55 = tpu.iota {dimensions = array<i32: 1>} : vector<1x64xi32>
    %c50_i32 = arith.constant 50 : i32
    %56 = vector.broadcast %c50_i32 : i32 to vector<1x64xi32>
    %57 = arith.cmpi slt, %55, %56 : vector<1x64xi32>
    %58 = arith.extui %57 : vector<1x64xi1> to vector<1x64xi32>
    %59 = arith.sitofp %58 : vector<1x64xi32> to vector<1x64xf32>
    %60 = vector.broadcast %50 : vector<8x1xf32> to vector<8x64xf32>
    %61 = arith.mulf %10, %60 : vector<8x64xf32>
    %62 = vector.broadcast %54 : vector<8x1xf32> to vector<8x64xf32>
    %63 = arith.addf %61, %62 : vector<8x64xf32>
    %64 = vector.broadcast %59 : vector<1x64xf32> to vector<8x64xf32>
    %65 = arith.mulf %63, %64 : vector<8x64xf32>
    %66 = arith.truncf %65 : vector<8x64xf32> to vector<8x64xbf16>
    %67 = vector.extract_strided_slice %66 {offsets = [0, 0], sizes = [4, 64], strides = [1, 1]} : vector<8x64xbf16> to vector<4x64xbf16>
    %68 = vector.extract_strided_slice %66 {offsets = [4, 0], sizes = [4, 64], strides = [1, 1]} : vector<8x64xbf16> to vector<4x64xbf16>
    %cst_24 = arith.constant dense<0.000000e+00> : vector<4x4xf32>
    %69 = tpu.matmul %67, %68, %cst_24 {dimension_numbers = #tpu.dot_dimension_numbers<[1], [1], [0], [0], [0, 0, 1, 0], [], []>} : vector<4x64xbf16>, vector<4x64xbf16>, vector<4x4xf32> -> vector<4x4xf32>
    %cst_25 = arith.constant dense<0xFF800000> : vector<4xf32>
    %70 = vector.multi_reduction <maximumf>, %69, %cst_25 [1] : vector<4x4xf32> to vector<4xf32>
    %71 = vector.shape_cast %70 : vector<4xf32> to vector<4x1xf32>
    %72 = vector.broadcast %71 : vector<4x1xf32> to vector<4x4xf32>
    %73 = arith.subf %69, %72 : vector<4x4xf32>
    %74 = math.exp %73 : vector<4x4xf32>
    %cst_26 = arith.constant dense<0.000000e+00> : vector<4xf32>
    %75 = vector.multi_reduction <add>, %74, %cst_26 [1] : vector<4x4xf32> to vector<4xf32>
    %76 = vector.shape_cast %75 : vector<4xf32> to vector<4x1xf32>
    %77 = tpu.reciprocal %76 {approx = true} : vector<4x1xf32> -> vector<4x1xf32>
    %78 = vector.broadcast %77 : vector<4x1xf32> to vector<4x4xf32>
    %79 = arith.mulf %74, %78 : vector<4x4xf32>
    %cst_27 = arith.constant dense<0.000000e+00> : vector<4xf32>
    %80 = vector.multi_reduction <add>, %79, %cst_27 [0] : vector<4x4xf32> to vector<4xf32>
    %81 = vector.shape_cast %80 : vector<4xf32> to vector<1x4xf32>
    %cst_28 = arith.constant 2.500000e-01 : f32
    %82 = vector.broadcast %cst_28 : f32 to vector<1x4xf32>
    %83 = arith.mulf %81, %82 : vector<1x4xf32>
    %84 = vector.broadcast %50 : vector<8x1xf32> to vector<8x64xf32>
    %85 = arith.mulf %22, %84 : vector<8x64xf32>
    %86 = vector.broadcast %54 : vector<8x1xf32> to vector<8x64xf32>
    %87 = arith.addf %85, %86 : vector<8x64xf32>
    %88 = vector.broadcast %59 : vector<1x64xf32> to vector<8x64xf32>
    %89 = arith.mulf %87, %88 : vector<8x64xf32>
    %90 = arith.truncf %89 : vector<8x64xf32> to vector<8x64xbf16>
    %91 = vector.extract_strided_slice %90 {offsets = [0, 0], sizes = [4, 64], strides = [1, 1]} : vector<8x64xbf16> to vector<4x64xbf16>
    %92 = vector.extract_strided_slice %90 {offsets = [4, 0], sizes = [4, 64], strides = [1, 1]} : vector<8x64xbf16> to vector<4x64xbf16>
    %cst_29 = arith.constant dense<0.000000e+00> : vector<4x4xf32>
    %93 = tpu.matmul %91, %92, %cst_29 {dimension_numbers = #tpu.dot_dimension_numbers<[1], [1], [0], [0], [0, 0, 1, 0], [], []>} : vector<4x64xbf16>, vector<4x64xbf16>, vector<4x4xf32> -> vector<4x4xf32>
    %cst_30 = arith.constant dense<0xFF800000> : vector<4xf32>
    %94 = vector.multi_reduction <maximumf>, %93, %cst_30 [1] : vector<4x4xf32> to vector<4xf32>
    %95 = vector.shape_cast %94 : vector<4xf32> to vector<4x1xf32>
    %96 = vector.broadcast %95 : vector<4x1xf32> to vector<4x4xf32>
    %97 = arith.subf %93, %96 : vector<4x4xf32>
    %98 = math.exp %97 : vector<4x4xf32>
    %cst_31 = arith.constant dense<0.000000e+00> : vector<4xf32>
    %99 = vector.multi_reduction <add>, %98, %cst_31 [1] : vector<4x4xf32> to vector<4xf32>
    %100 = vector.shape_cast %99 : vector<4xf32> to vector<4x1xf32>
    %101 = tpu.reciprocal %100 {approx = true} : vector<4x1xf32> -> vector<4x1xf32>
    %102 = vector.broadcast %101 : vector<4x1xf32> to vector<4x4xf32>
    %103 = arith.mulf %98, %102 : vector<4x4xf32>
    %cst_32 = arith.constant dense<0.000000e+00> : vector<4xf32>
    %104 = vector.multi_reduction <add>, %103, %cst_32 [0] : vector<4x4xf32> to vector<4xf32>
    %105 = vector.shape_cast %104 : vector<4xf32> to vector<1x4xf32>
    %cst_33 = arith.constant 2.500000e-01 : f32
    %106 = vector.broadcast %cst_33 : f32 to vector<1x4xf32>
    %107 = arith.mulf %105, %106 : vector<1x4xf32>
    %108 = tpu.concatenate %83, %107 in 0 : vector<1x4xf32>, vector<1x4xf32> -> vector<2x4xf32>
    %c0_34 = arith.constant 0 : index
    %c0_35 = arith.constant 0 : index
    %109 = vector.load %arg2[%c0_34, %c0_35] : memref<2x4xf32, #tpu.memory_space<vmem>>, vector<2x4xf32>
    tpu.vector_store %arg2[%c0_34, %c0_35], %108 {strides = array<i32>} : memref<2x4xf32, #tpu.memory_space<vmem>>, vector<2x4xf32>,
    return
  }
}

</mosaic_0001>

<llo_original>
// kernel: multi_tensor_attention.1
$region0: #{multi_tensor_attention.1}
  #allocation0 [shape = 'u32[]', space=smem, size = 0x4, offset = 0x4, fixed_abs, tag = 'smem constant byte address 0x4 - core index']
  #allocation1 [shape = 'u32[144,128]{1,0:T(1,128)}', space=vmem, size = 0x12000, scoped, tag = 'internal scratch']
  %s0 = inlined_call_operand.vmem [shape: bf16[2,80,64], index: 0, kind: input, shape index: {}]
  %s1 = inlined_call_operand.vmem [shape: f32[8,82], index: 1, kind: input, shape index: {}]
  %s2 = inlined_call_operand.hbm [shape: f32[2,4], index: 2, kind: output, shape index: {}]
  %s3 = sld [smem:[#allocation0]]
  $region18: #{multi_tensor_attention.1} parent=0
    _
  %s5 = ssub.s32 1, %s3
  %s6 = scalar_select 0, %s5, %s3
  $region1: #{multi_tensor_attention.1} parent=0
    #allocation2 [shape = 'u8[1024]{0}', space=vmem, size = 0x400, scoped, tag = 'output window, operand 0, single buffered']
    #allocation3 [shape = 's32[1]{0}', space=sflag, size = 0x4, scoped, tag = 'scoped memory for multi_tensor_attention.1']
    %7 = vsyncpa [#allocation3], 0
    // Predicated region
    $region2: #{multi_tensor_attention.1} parent=1 // pred_check
      _
    $region3: #{multi_tensor_attention.1} parent=1 // pred_check_branch
      %9 = sbr.rel (0) target = $region5
    $region4: #{multi_tensor_attention.1} parent=1 // pred_region
      _
    $region5: #{multi_tensor_attention.1} parent=1 // pred_fallthru
      _
    // Predicated region
    $region6: #{multi_tensor_attention.1} parent=1 // pred_check
      _
    $region7: #{multi_tensor_attention.1} parent=1 // pred_check_branch
      %11 = sbr.rel (0) target = $region9
    $region8: #{multi_tensor_attention.1} parent=1 // pred_region
      _
    $region9: #{multi_tensor_attention.1} parent=1 // pred_fallthru
      _
    %v13 = vld [vmem:[%s1] sm:$0xff]
    %v14 = vpack.c.bf16 %v13, %v13
    %v15 = vld [vmem:[%s0] sm:$0xf]
    %v16 = vld [vmem:[%s0 + $0x4] sm:$0xf]
    %v17 = vld [vmem:[%s0 + $0x8] sm:$0xf]
    %v18 = vld [vmem:[%s0 + $0xc] sm:$0xf]
    %v19 = vld [vmem:[%s0 + $0x10] sm:$0xf]
    %v20 = vld [vmem:[%s0 + $0x14] sm:$0xf]
    %v21 = vld [vmem:[%s0 + $0x18] sm:$0xf]
    %v22 = vld [vmem:[%s0 + $0x1c] sm:$0xf]
    %v23 = vld [vmem:[%s0 + $0x20] sm:$0xf]
    %v24 = vld [vmem:[%s0 + $0x24] sm:$0xf]
    %v35 = vunpack.c.l.b16 %v15
    %v36 = vunpack.c.l.b16 %v16
    %v37 = vunpack.c.l.b16 %v17
    %v38 = vunpack.c.l.b16 %v18
    %v39 = vunpack.c.l.b16 %v19
    %v40 = vunpack.c.l.b16 %v20
    %v41 = vunpack.c.l.b16 %v21
    %v42 = vunpack.c.l.b16 %v22
    %v43 = vunpack.c.l.b16 %v23
    %v44 = vunpack.c.l.b16 %v24
    %v45 = vpack.c.b16 %v36, %v35
    %v46 = vpack.c.b16 %v38, %v37
    %v47 = vpack.c.b16 %v40, %v39
    %v48 = vpack.c.b16 %v42, %v41
    %v49 = vpack.c.b16 %v44, %v43
    %vm55 = vcmask 654336
    %v57 = vsel %vm55, %v14, 0
    %59 = vmatprep.subr.bf16.mxu0 0
    %60 = vmatpush1.bf16.msra.mxu0 %v45
    %61 = vmatprep.subr.bf16.mxu0 0
    %62 = vmatpush1.bf16.msra.mxu0 %v46
    %63 = vmatprep.subr.bf16.mxu0 0
    %64 = vmatpush1.bf16.msra.mxu0 %v47
    %65 = vmatprep.subr.bf16.mxu0 0
    %66 = vmatpush1.bf16.msra.mxu0 %v48
    %67 = vmatprep.subr.bf16.mxu0 0
    %68 = vmatpush1.bf16.msra.mxu0 %v49
    %69 = vmatprep.subr.bf16.mxu0 0
    %70 = vmatpush1.bf16.msra.mxu0 0
    %71 = vmatprep.subr.bf16.mxu0 0
    %72 = vmatpush1.bf16.msra.mxu0 0
    %73 = vmatprep.subr.bf16.mxu0 0
    %74 = vmatpush1.bf16.msra.mxu0 0
    %75 = vmatprep.subr.bf16.mxu0 0
    %76 = vmatpush1.bf16.msra.mxu0 0
    %77 = vmatprep.subr.bf16.mxu0 0
    %78 = vmatpush1.bf16.msra.mxu0 0
    %79 = vmatprep.subr.bf16.mxu0 0
    %80 = vmatpush1.bf16.msra.mxu0 0
    %81 = vmatprep.subr.bf16.mxu0 0
    %82 = vmatpush1.bf16.msra.mxu0 0
    %83 = vmatprep.subr.bf16.mxu0 0
    %84 = vmatpush1.bf16.msra.mxu0 0
    %85 = vmatprep.subr.bf16.mxu0 0
    %86 = vmatpush1.bf16.msra.mxu0 0
    %87 = vmatprep.subr.bf16.mxu0 0
    %88 = vmatpush1.bf16.msra.mxu0 0
    %89 = vmatprep.subr.bf16.mxu0 0
    %90 = vmatpush1.bf16.msra.mxu0 0
    %91 = vmatprep.mubr.bf16.mxu0 0
    %92 = vmatmul.mubr.bf16.gmra.mrb[0].mxu0 %v57
    %v93 = vpop.f32.mrb[0].mxu0
    %v94 = vadd.f32 0.0, %v93
    %v95 = vpop.f32.mrb[0].mxu0
    %v96 = vpop.f32.mrb[0].mxu0
    %v97 = vpop.f32.mrb[0].mxu0
    %98 = vdwg.mxu0
    %v99 = vmax.f32 %v94, 0.0
    %vm100 = vcmask 523264
    %v101 = vsel %vm100, %v99, 0.0
    %102 = vadd.xlane.f32.xlu0 %v101
    %v103 = vpop.xlane.xlu0 %102
    %v104 = vadd.f32 %v103, 0.0
    %v105 = vmul.f32 %v99, %v99
    %v106 = vsel %vm100, %v105, 0.0
    %107 = vadd.xlane.f32.xlu0 %v106
    %v108 = vpop.xlane.xlu0 %107
    %v109 = vadd.f32 %v108, 0.0
    %s110 = scalar_lea.vmem %s0, 40
    %v111 = vld [vmem:[%s110] sm:$0xf]
    %v112 = vld [vmem:[%s110 + $0x4] sm:$0xf]
    %v113 = vld [vmem:[%s110 + $0x8] sm:$0xf]
    %v114 = vld [vmem:[%s110 + $0xc] sm:$0xf]
    %v115 = vld [vmem:[%s110 + $0x10] sm:$0xf]
    %v116 = vld [vmem:[%s110 + $0x14] sm:$0xf]
    %v117 = vld [vmem:[%s110 + $0x18] sm:$0xf]
    %v118 = vld [vmem:[%s110 + $0x1c] sm:$0xf]
    %v119 = vld [vmem:[%s110 + $0x20] sm:$0xf]
    %v120 = vld [vmem:[%s110 + $0x24] sm:$0xf]
    %v131 = vunpack.c.l.b16 %v111
    %v132 = vunpack.c.l.b16 %v112
    %v133 = vunpack.c.l.b16 %v113
    %v134 = vunpack.c.l.b16 %v114
    %v135 = vunpack.c.l.b16 %v115
    %v136 = vunpack.c.l.b16 %v116
    %v137 = vunpack.c.l.b16 %v117
    %v138 = vunpack.c.l.b16 %v118
    %v139 = vunpack.c.l.b16 %v119
    %v140 = vunpack.c.l.b16 %v120
    %v141 = vpack.c.b16 %v132, %v131
    %v142 = vpack.c.b16 %v134, %v133
    %v143 = vpack.c.b16 %v136, %v135
    %v144 = vpack.c.b16 %v138, %v137
    %v145 = vpack.c.b16 %v140, %v139
    %151 = vmatprep.subr.bf16.mxu0 0
    %152 = vmatpush1.bf16.msra.mxu0 %v141
    %153 = vmatprep.subr.bf16.mxu0 0
    %154 = vmatpush1.bf16.msra.mxu0 %v142
    %155 = vmatprep.subr.bf16.mxu0 0
    %156 = vmatpush1.bf16.msra.mxu0 %v143
    %157 = vmatprep.subr.bf16.mxu0 0
    %158 = vmatpush1.bf16.msra.mxu0 %v144
    %159 = vmatprep.subr.bf16.mxu0 0
    %160 = vmatpush1.bf16.msra.mxu0 %v145
    %161 = vmatprep.subr.bf16.mxu0 0
    %162 = vmatpush1.bf16.msra.mxu0 0
    %163 = vmatprep.subr.bf16.mxu0 0
    %164 = vmatpush1.bf16.msra.mxu0 0
    %165 = vmatprep.subr.bf16.mxu0 0
    %166 = vmatpush1.bf16.msra.mxu0 0
    %167 = vmatprep.subr.bf16.mxu0 0
    %168 = vmatpush1.bf16.msra.mxu0 0
    %169 = vmatprep.subr.bf16.mxu0 0
    %170 = vmatpush1.bf16.msra.mxu0 0
    %171 = vmatprep.subr.bf16.mxu0 0
    %172 = vmatpush1.bf16.msra.mxu0 0
    %173 = vmatprep.subr.bf16.mxu0 0
    %174 = vmatpush1.bf16.msra.mxu0 0
    %175 = vmatprep.subr.bf16.mxu0 0
    %176 = vmatpush1.bf16.msra.mxu0 0
    %177 = vmatprep.subr.bf16.mxu0 0
    %178 = vmatpush1.bf16.msra.mxu0 0
    %179 = vmatprep.subr.bf16.mxu0 0
    %180 = vmatpush1.bf16.msra.mxu0 0
    %181 = vmatprep.subr.bf16.mxu0 0
    %182 = vmatpush1.bf16.msra.mxu0 0
    %183 = vmatprep.mubr.bf16.mxu0 0
    %184 = vmatmul.mubr.bf16.gmra.mrb[0].mxu0 %v57
    %v185 = vpop.f32.mrb[0].mxu0
    %v186 = vadd.f32 0.0, %v185
    %v187 = vpop.f32.mrb[0].mxu0
    %v188 = vpop.f32.mrb[0].mxu0
    %v189 = vpop.f32.mrb[0].mxu0
    %190 = vdwg.mxu0
    %v191 = vmax.f32 %v186, 0.0
    %v192 = vsel %vm100, %v191, 0.0
    %193 = vadd.xlane.f32.xlu0 %v192
    %v194 = vpop.xlane.xlu0 %193
    %v195 = vadd.f32 %v104, %v194
    %v196 = vmul.f32 %v191, %v191
    %v197 = vsel %vm100, %v196, 0.0
    %198 = vadd.xlane.f32.xlu0 %v197
    %v199 = vpop.xlane.xlu0 %198
    %v200 = vadd.f32 %v109, %v199
    %v201 = vmul.f32 %v195, 0.01
    %v202 = vmul.f32 %v200, 0.01
    %v203 = vmul.f32 %v201, %v201
    %v204 = vsub.f32 %v202, %v203
    %v205 = vmax.f32 %v204, 0.0
    %v206 = vadd.f32 %v205, 1e-05
    %v207 = vrsqrt.pop %v206
    %v208 = vlaneseq
    %v209 = vshrl.u32 %v208, 7
    %vm210 = vcmp.lt.s32.totalorder %v209, 4
    %v211 = vsel %vm210, 0.14142136, 1.0
    %v212 = vmul.f32 %v13, %v207
    %v213 = vmul.f32 %v212, %v211
    %v214 = vmul.f32 %v13, %v201
    %v215 = vmul.f32 %v214, %v207
    %217 = vrot.lane.b32.xlu0 %v215, 1
    %v218 = vpop.permute.xlu0 %217
    %v220 = vsub.f32 %v13, %v218
    %v221 = vmul.f32 %v220, %v211
    %v222 = vlaneseq
    %v223 = vand.u32 %v222, 127
    %vm224 = vcmp.lt.s32.totalorder %v223, 50
    %v225 = vsel %vm224, 1, 0
    %v226 = vcvt.s32.f32 %v225
    %228 = vset.pattern.permute.xlu0 80
    %229 = vperm.xlu0 %228, %v213
    %v230 = vpop.permute.xlu0 %229
    %v232 = vmul.f32 %v99, %v230
    %234 = vset.pattern.permute.xlu0 81
    %235 = vperm.xlu0 %234, %v221
    %v236 = vpop.permute.xlu0 %235
    %v238 = vadd.f32 %v232, %v236
    %v239 = vmul.f32 %v238, %v226
    %v240 = vpack.c.bf16 %v239, %v239
    %v242 = vrot.slane %v240, 2
    %v244 = vsel %vm100, %v240, 0
    %v247 = vsel %vm100, %v242, 0
    %249 = vmatprep.subr.bf16.mxu0 0
    %250 = vmatpush1.bf16.xpose.msra.mxu0 %v247
    %251 = vmatprep.subr.bf16.mxu0 0
    %252 = vmatpush1.bf16.xpose.msra.mxu0 0
    %253 = vmatprep.subr.bf16.mxu0 0
    %254 = vmatpush1.bf16.xpose.msra.mxu0 0
    %255 = vmatprep.subr.bf16.mxu0 0
    %256 = vmatpush1.bf16.xpose.msra.mxu0 0
    %257 = vmatprep.subr.bf16.mxu0 0
    %258 = vmatpush1.bf16.xpose.msra.mxu0 0
    %259 = vmatprep.subr.bf16.mxu0 0
    %260 = vmatpush1.bf16.xpose.msra.mxu0 0
    %261 = vmatprep.subr.bf16.mxu0 0
    %262 = vmatpush1.bf16.xpose.msra.mxu0 0
    %263 = vmatprep.subr.bf16.mxu0 0
    %264 = vmatpush1.bf16.xpose.msra.mxu0 0
    %265 = vmatprep.subr.bf16.mxu0 0
    %266 = vmatpush1.bf16.xpose.msra.mxu0 0
    %267 = vmatprep.subr.bf16.mxu0 0
    %268 = vmatpush1.bf16.xpose.msra.mxu0 0
    %269 = vmatprep.subr.bf16.mxu0 0
    %270 = vmatpush1.bf16.xpose.msra.mxu0 0
    %271 = vmatprep.subr.bf16.mxu0 0
    %272 = vmatpush1.bf16.xpose.msra.mxu0 0
    %273 = vmatprep.subr.bf16.mxu0 0
    %274 = vmatpush1.bf16.xpose.msra.mxu0 0
    %275 = vmatprep.subr.bf16.mxu0 0
    %276 = vmatpush1.bf16.xpose.msra.mxu0 0
    %277 = vmatprep.subr.bf16.mxu0 0
    %278 = vmatpush1.bf16.xpose.msra.mxu0 0
    %279 = vmatprep.subr.bf16.mxu0 0
    %280 = vmatpush1.bf16.xpose.msra.mxu0 0
    %281 = vmatprep.mubr.bf16.mxu0 0
    %282 = vmatmul.mubr.bf16.gmra.mrb[0].mxu0 %v244
    %v283 = vpop.f32.mrb[0].mxu0
    %v284 = vadd.f32 0.0, %v283
    %v285 = vpop.f32.mrb[0].mxu0
    %v286 = vpop.f32.mrb[0].mxu0
    %v287 = vpop.f32.mrb[0].mxu0
    %288 = vdwg.mxu0
    %vm289 = vcmask 27648
    %v290 = vsel %vm289, %v284, -inf
    %291 = vmax.xlane.f32.xlu0 %v290
    %v292 = vpop.xlane.xlu0 %291
    %v293 = vsub.f32 %v284, %v292
    %v294 = vmul.f32 %v293, 1.442695
    %v295 = vpow.pop %v294
    %v296 = vsel %vm289, %v295, 0.0
    %297 = vadd.xlane.f32.xlu0 %v296
    %v298 = vpop.xlane.xlu0 %297
    %v299 = vrcp.pop %v298
    %v300 = vmul.f32 %v295, %v299
    %v301 = vsel %vm289, %v300, 0.0
    %v302 = vrot.slane %v301, 4
    %v303 = vadd.f32 %v301, %v302
    %v304 = vrot.slane %v303, 2
    %v305 = vadd.f32 %v303, %v304
    %v306 = vrot.slane %v305, 1
    %v307 = vadd.f32 %v305, %v306
    %v308 = vmul.f32 %v307, 0.25
    %v309 = vmul.f32 %v191, %v230
    %v310 = vadd.f32 %v309, %v236
    %v311 = vmul.f32 %v310, %v226
    %v312 = vpack.c.bf16 %v311, %v311
    %v314 = vrot.slane %v312, 2
    %v316 = vsel %vm100, %v312, 0
    %v319 = vsel %vm100, %v314, 0
    %321 = vmatprep.subr.bf16.mxu0 0
    %322 = vmatpush1.bf16.xpose.msra.mxu0 %v319
    %323 = vmatprep.subr.bf16.mxu0 0
    %324 = vmatpush1.bf16.xpose.msra.mxu0 0
    %325 = vmatprep.subr.bf16.mxu0 0
    %326 = vmatpush1.bf16.xpose.msra.mxu0 0
    %327 = vmatprep.subr.bf16.mxu0 0
    %328 = vmatpush1.bf16.xpose.msra.mxu0 0
    %329 = vmatprep.subr.bf16.mxu0 0
    %330 = vmatpush1.bf16.xpose.msra.mxu0 0
    %331 = vmatprep.subr.bf16.mxu0 0
    %332 = vmatpush1.bf16.xpose.msra.mxu0 0
    %333 = vmatprep.subr.bf16.mxu0 0
    %334 = vmatpush1.bf16.xpose.msra.mxu0 0
    %335 = vmatprep.subr.bf16.mxu0 0
    %336 = vmatpush1.bf16.xpose.msra.mxu0 0
    %337 = vmatprep.subr.bf16.mxu0 0
    %338 = vmatpush1.bf16.xpose.msra.mxu0 0
    %339 = vmatprep.subr.bf16.mxu0 0
    %340 = vmatpush1.bf16.xpose.msra.mxu0 0
    %341 = vmatprep.subr.bf16.mxu0 0
    %342 = vmatpush1.bf16.xpose.msra.mxu0 0
    %343 = vmatprep.subr.bf16.mxu0 0
    %344 = vmatpush1.bf16.xpose.msra.mxu0 0
    %345 = vmatprep.subr.bf16.mxu0 0
    %346 = vmatpush1.bf16.xpose.msra.mxu0 0
    %347 = vmatprep.subr.bf16.mxu0 0
    %348 = vmatpush1.bf16.xpose.msra.mxu0 0
    %349 = vmatprep.subr.bf16.mxu0 0
    %350 = vmatpush1.bf16.xpose.msra.mxu0 0
    %351 = vmatprep.subr.bf16.mxu0 0
    %352 = vmatpush1.bf16.xpose.msra.mxu0 0
    %353 = vmatprep.mubr.bf16.mxu0 0
    %354 = vmatmul.mubr.bf16.gmra.mrb[0].mxu0 %v316
    %v355 = vpop.f32.mrb[0].mxu0
    %v356 = vadd.f32 0.0, %v355
    %v357 = vpop.f32.mrb[0].mxu0
    %v358 = vpop.f32.mrb[0].mxu0
    %v359 = vpop.f32.mrb[0].mxu0
    %360 = vdwg.mxu0
    %v361 = vsel %vm289, %v356, -inf
    %362 = vmax.xlane.f32.xlu0 %v361
    %v363 = vpop.xlane.xlu0 %362
    %v364 = vsub.f32 %v356, %v363
    %v365 = vmul.f32 %v364, 1.442695
    %v366 = vpow.pop %v365
    %v367 = vsel %vm289, %v366, 0.0
    %368 = vadd.xlane.f32.xlu0 %v367
    %v369 = vpop.xlane.xlu0 %368
    %v370 = vrcp.pop %v369
    %v371 = vmul.f32 %v366, %v370
    %v372 = vsel %vm289, %v371, 0.0
    %v373 = vrot.slane %v372, 4
    %v374 = vadd.f32 %v372, %v373
    %v375 = vrot.slane %v374, 2
    %v376 = vadd.f32 %v374, %v375
    %v377 = vrot.slane %v376, 1
    %v378 = vadd.f32 %v376, %v377
    %v379 = vmul.f32 %v378, 0.25
    %vm380 = vcmask 1040384
    %v381 = vsel %vm380, %v308, %v379
    %vm382 = vcmask 25600
    %383 = vst.msk [vmem:[#allocation2] sm:$0x3] %vm382, %v381
    // Predicated region
    $region10: #{multi_tensor_attention.1} parent=1 // pred_check
      _
    $region11: #{multi_tensor_attention.1} parent=1 // pred_check_branch
      %385 = sbr.rel (0) target = $region13
    $region12: #{multi_tensor_attention.1} parent=1 // pred_region
      %s387 = ssub.s32 32, 32
      %388 = vsyncadd [#allocation3], %s387
      %s390 = sshll.u32 [#allocation2], 4
      %s391 = int_to_ptr.vmem [resolvable:$true] %s390
      %393 = dma.vmem_to_hbm [thread:$0]  %s391, 32, %s2, [#allocation3]
    $region13: #{multi_tensor_attention.1} parent=1 // pred_fallthru
      _
    // Predicated region
    $region14: #{multi_tensor_attention.1} parent=1 // pred_check
      _
    $region15: #{multi_tensor_attention.1} parent=1 // pred_check_branch
      %395 = sbr.rel (0) target = $region17
    $region16: #{multi_tensor_attention.1} parent=1 // pred_region
      %396 = dma.done [#allocation3], 32
    $region17: #{multi_tensor_attention.1} parent=1 // pred_fallthru
      _
    %397 = vsyncpa [#allocation3], 1

</llo_original>
